<compile_context>
chip_gen: v7x
topology: tpu7x:2x2x1
jax: 0.10.0
libtpu: 0.0.40
codegen_flags: <defaults>
</compile_context>

<pallas_src>
import functools

import jax
import jax.numpy as jnp
from jax.experimental import pallas as pl
from jax.experimental.pallas import tpu as pltpu


def _round_up(v, m):
    return ((v + m - 1) // m) * m


def cnn_relu_maxpool_kernel(x_ref, w_ref, b_ref, o_ref, conv_ref, *, pad):
    # x_ref:   (TN, L, D)        producer dtype (e.g. f32), cast in VMEM
    # w_ref:   (k1, D, F_pad)    bf16
    # b_ref:   (1, F_pad)        f32
    # o_ref:   (TN, F_pad)
    # conv_ref:(TN, L_out, F_pad) f32 VMEM scratch (conv accumulator)
    TN, L, _ = x_ref.shape
    k1, _, F_pad = w_ref.shape
    l_out = conv_ref.shape[1]

    # Cast the streamed tile to the compute dtype once (VPU, hidden under DMA).
    xb = x_ref[...].astype(w_ref.dtype)

    for r in range(k1):
        # MXU: (TN*L, D) @ (D, F_pad), f32 accumulation.
        y = jax.lax.dot_general(
            xb, w_ref[r],
            dimension_numbers=(((2,), (0,)), ((), ())),
            preferred_element_type=jnp.float32)            # (TN, L, F_pad)

        # conv[t] = sum_r y_r[t + r - pad]; the shift is applied on the narrow
        # lane-dense F_pad-wide output, never on the D-wide input.
        s = r - pad
        t_lo = max(0, -s)
        t_hi = min(l_out, L - s)
        core = y[:, t_lo + s:t_hi + s, :]
        if r == 0:
            # First tap initializes the accumulator (zero only the boundary
            # rows that the zero-padding of x would have produced).
            if t_lo > 0:
                conv_ref[:, :t_lo, :] = jnp.zeros(
                    (TN, t_lo, F_pad), conv_ref.dtype)
            if t_hi < l_out:
                conv_ref[:, t_hi:, :] = jnp.zeros(
                    (TN, l_out - t_hi, F_pad), conv_ref.dtype)
            conv_ref[:, t_lo:t_hi, :] = core
        else:
            conv_ref[:, t_lo:t_hi, :] += core

    # max_t relu(conv_t + b) == relu(max_t conv_t + b): fold bias/ReLU to
    # (TN, F_pad) after the sequence reduction.
    run_max = jnp.max(conv_ref[...], axis=1)               # (TN, F_pad)
    o_ref[...] = jnp.maximum(run_max + b_ref[...], 0.0).astype(o_ref.dtype)


def _choose_tile_n(N, per_row_bytes, budget_bytes, tile_n_target=None):
    """Largest divisor of N (multiple of 8, or == N) whose tile fits VMEM."""
    cap = max(1, budget_bytes // max(per_row_bytes, 1))
    if tile_n_target is not None:
        cap = min(cap, tile_n_target)
    valid = [d for d in range(1, N + 1)
             if N % d == 0 and (d == N or d % 8 == 0)]
    fitting = [d for d in valid if d <= cap]
    if not fitting:
        return min(valid)  # smallest legal tile; block dims == full dims is ok
    best = max(fitting)
    if N // best > 1:
        # Mild preference for an even grid (v7x: 2 TCs share the parallel axis)
        even = [d for d in fitting if (N // d) % 2 == 0 and 4 * d >= 3 * best]
        if even:
            return max(even)
    return best


def cnn_forward_max(x, w_torch, b, max_num, review_len, k1, padding=True,
                    tile_n=None, compute_dtype=jnp.bfloat16):
    """x: (B, max_num, review_len, k2) float32
       w_torch: (F, 1, k1, k2) (PyTorch Conv2d weight layout), b: (F,)
       Returns (B, max_num, F) == CNN.forward(..., pooling='MAX')."""
    B = x.shape[0]
    k2 = w_torch.shape[-1]
    F_ = w_torch.shape[0]
    N = B * max_num
    assert review_len >= k1, "review_len must be >= conv kernel height"

    pad = (k1 // 2) if padding else 0
    L_out = review_len + 2 * pad - k1 + 1
    F_pad = _round_up(F_, 128)

    # Weight/bias prep (tiny arrays): (F,1,k1,k2) -> (k1,k2,F_pad), (1,F_pad).
    w_k = jnp.transpose(w_torch[:, 0, :, :], (1, 2, 0)).astype(compute_dtype)
    if F_pad != F_:
        w_k = jnp.pad(w_k, ((0, 0), (0, 0), (0, F_pad - F_)))
        b_p = jnp.pad(b, (0, F_pad - F_))
    else:
        b_p = b
    b2 = b_p.reshape(1, F_pad).astype(jnp.float32)

    # x stays in its producer dtype; leading-dim reshape is free (no copy).
    xr = x.reshape(N, review_len, k2)

    # --- VMEM budget -> TN (divisor of N; no jnp.pad over N) ---------------
    D_lanes = _round_up(k2, 128)          # k2=300 rounds to 384 lanes in VMEM
    Lr = _round_up(review_len, 8)
    Lo = _round_up(L_out, 8)
    ibytes = x.dtype.itemsize
    per_row = (2 * Lr * D_lanes * ibytes   # input tile, double-buffered
               + Lr * D_lanes * 2          # in-kernel bf16 copy
               + Lo * F_pad * 4            # conv accumulator scratch (f32)
               + Lr * F_pad * 4)           # per-tap matmul result (f32)
    try:
        vmem_cap = pltpu.get_tpu_info().vmem_capacity_bytes
    except Exception:
        vmem_cap = 64 * 1024 * 1024
    # ~100 MiB on v5e/v6e (128 MiB physical), ~51 MiB on v7x (64 MiB physical)
    vmem_limit = min(100 * 1024 * 1024, int(vmem_cap * 0.8))
    fixed = 2 * k1 * D_lanes * F_pad * 2 + 4 * F_pad * 4 + (1 << 20)
    budget = max(per_row, int(vmem_limit * 0.75) - fixed)
    TN = _choose_tile_n(N, per_row, budget, tile_n)
    grid = (N // TN,)

    out = pl.pallas_call(
        functools.partial(cnn_relu_maxpool_kernel, pad=pad),
        out_shape=jax.ShapeDtypeStruct((N, F_pad), x.dtype),
        grid_spec=pltpu.PrefetchScalarGridSpec(
            num_scalar_prefetch=0,
            grid=grid,
            in_specs=[
                pl.BlockSpec((TN, review_len, k2), lambda i: (i, 0, 0)),
                pl.BlockSpec((k1, k2, F_pad), lambda i: (0, 0, 0)),
                pl.BlockSpec((1, F_pad), lambda i: (0, 0)),
            ],
            out_specs=pl.BlockSpec((TN, F_pad), lambda i: (i, 0)),
            scratch_shapes=[pltpu.VMEM((TN, L_out, F_pad), jnp.float32)],
        ),
        compiler_params=pltpu.CompilerParams(
            dimension_semantics=("parallel",),   # shard N across TCs (v7x)
            vmem_limit_bytes=vmem_limit,
        ),
    )(xr, w_k, b2)

    # Drop the lane-padding of F and restore (B, max_num, F).
    return out[:, :F_].reshape(B, max_num, F_)


def ref_forward_max(x, w_torch, b, max_num, review_len, k1, padding=True,
                    compute_dtype=jnp.bfloat16):
    """Pure-JAX reference mirroring the PyTorch forward (pooling='MAX'),
    with the same bf16-operand / f32-accumulate numerics as the kernel."""
    B = x.shape[0]
    k2 = w_torch.shape[-1]
    F_ = w_torch.shape[0]
    N = B * max_num
    xr = x.reshape(N, review_len, k2).astype(compute_dtype)
    pad = (k1 // 2) if padding else 0
    x_pad = jnp.pad(xr, ((0, 0), (pad, pad), (0, 0)))
    L_out = review_len + 2 * pad - k1 + 1
    w_k = jnp.transpose(w_torch[:, 0, :, :], (1, 2, 0)).astype(compute_dtype)
    acc = jnp.zeros((N, L_out, F_), jnp.float32)
    for r in range(k1):
        acc = acc + jax.lax.dot_general(
            x_pad[:, r:r + L_out, :], w_k[r],
            dimension_numbers=(((2,), (0,)), ((), ())),
            preferred_element_type=jnp.float32)
    h = jnp.maximum(acc + b[None, None, :].astype(jnp.float32), 0.0)
    return jnp.max(h, axis=1).reshape(B, max_num, F_).astype(x.dtype)


if __name__ == "__main__":
    key = jax.random.PRNGKey(0)
    kx, kw, kb, kx2, kx3 = jax.random.split(key, 5)

    # --- test 1: single tile (TN == N), padding=True ---
    B, max_num, review_len, k2 = 2, 3, 16, 32   # prod shape is (32, 11, 224, 300)
    filters_num, k1 = 8, 3
    x = jax.random.normal(kx, (B, max_num, review_len, k2), dtype=jnp.float32)
    w = 0.1 * jax.random.normal(kw, (filters_num, 1, k1, k2), dtype=jnp.float32)
    b = 0.1 * jax.random.normal(kb, (filters_num,), dtype=jnp.float32)

    out = jax.block_until_ready(
        cnn_forward_max(x, w, b, max_num, review_len, k1, padding=True))
    ref = ref_forward_max(x, w, b, max_num, review_len, k1, padding=True)
    assert out.shape == (B, max_num, filters_num)
    assert jnp.allclose(out, ref, atol=2e-3, rtol=2e-3)

    # --- test 2: multi-tile grid (N=16, TN=8 -> grid=2), padding=True ---
    B2, max_num2 = 4, 4
    x2 = jax.random.normal(kx2, (B2, max_num2, review_len, k2), dtype=jnp.float32)
    out2 = jax.block_until_ready(
        cnn_forward_max(x2, w, b, max_num2, review_len, k1, padding=True, tile_n=8))
    ref2 = ref_forward_max(x2, w, b, max_num2, review_len, k1, padding=True)
    assert out2.shape == (B2, max_num2, filters_num)
    assert jnp.allclose(out2, ref2, atol=2e-3, rtol=2e-3)

    # --- test 3: padding=False ('valid' conv along the sequence) ---
    B3, max_num3 = 2, 4
    x3 = jax.random.normal(kx3, (B3, max_num3, review_len, k2), dtype=jnp.float32)
    out3 = jax.block_until_ready(
        cnn_forward_max(x3, w, b, max_num3, review_len, k1, padding=False))
    ref3 = ref_forward_max(x3, w, b, max_num3, review_len, k1, padding=False)
    assert out3.shape == (B3, max_num3, filters_num)
    assert jnp.allclose(out3, ref3, atol=2e-3, rtol=2e-3)

    print("KERNEL_OK")
</pallas_src>

<mosaic_0001>
module attributes {stable_mosaic.version = 11 : i64} {
  func.func @cnn_relu_maxpool_kernel(%arg0: i32, %arg1: memref<6x16x32xf32, #tpu.memory_space<vmem>>, %arg2: memref<3x32x128xbf16, #tpu.memory_space<vmem>>, %arg3: memref<1x128xf32, #tpu.memory_space<vmem>>, %arg4: memref<6x128xf32, #tpu.memory_space<vmem>>, %arg5: memref<6x16x128xf32, #tpu.memory_space<vmem>>) attributes {dimension_semantics = [#tpu.dimension_semantics<parallel>], iteration_bounds = array<i64: 1>, scalar_prefetch = 0 : i64, scratch_operands = 1 : i64, tpu.core_type = #tpu.core_type<tc>, window_params = [{transform_indices = @transform_0, window_bounds = array<i64: 6, 16, 32>}, {pipeline_mode = #tpu.pipeline_mode<synchronous>, transform_indices = @transform_1, window_bounds = array<i64: 3, 32, 128>}, {pipeline_mode = #tpu.pipeline_mode<synchronous>, transform_indices = @transform_2, window_bounds = array<i64: 1, 128>}, {transform_indices = @transform_3, window_bounds = array<i64: 6, 128>}]} {
    %c0 = arith.constant 0 : index
    %c0_0 = arith.constant 0 : index
    %c0_1 = arith.constant 0 : index
    %0 = vector.load %arg1[%c0, %c0_0, %c0_1] : memref<6x16x32xf32, #tpu.memory_space<vmem>>, vector<6x16x32xf32>
    %1 = arith.truncf %0 : vector<6x16x32xf32> to vector<6x16x32xbf16>
    %c0_2 = arith.constant 0 : index
    %c0_3 = arith.constant 0 : index
    %c0_4 = arith.constant 0 : index
    %2 = vector.load %arg2[%c0_2, %c0_3, %c0_4] : memref<3x32x128xbf16, #tpu.memory_space<vmem>>, vector<1x32x128xbf16>
    %3 = vector.shape_cast %2 : vector<1x32x128xbf16> to vector<32x128xbf16>
    %cst = arith.constant dense<0.000000e+00> : vector<6x16x128xf32>
    %4 = tpu.matmul %1, %3, %cst {dimension_numbers = #tpu.dot_dimension_numbers<[2], [0], [0, 1], [1], [0, 0, 0, 1, 1, 1], [], []>} : vector<6x16x32xbf16>, vector<32x128xbf16>, vector<6x16x128xf32> -> vector<6x16x128xf32>
    %5 = vector.extract_strided_slice %4 {offsets = [0, 0, 0], sizes = [6, 15, 128], strides = [1, 1, 1]} : vector<6x16x128xf32> to vector<6x15x128xf32>
    %cst_5 = arith.constant 0.000000e+00 : f32
    %6 = vector.broadcast %cst_5 : f32 to vector<6x1x128xf32>
    %c0_6 = arith.constant 0 : index
    %c0_7 = arith.constant 0 : index
    %c0_8 = arith.constant 0 : index
    %7 = vector.load %arg5[%c0_6, %c0_7, %c0_8] : memref<6x16x128xf32, #tpu.memory_space<vmem>>, vector<6x1x128xf32>
    tpu.vector_store %arg5[%c0_6, %c0_7, %c0_8], %6 {strides = array<i32>} : memref<6x16x128xf32, #tpu.memory_space<vmem>>, vector<6x1x128xf32>,
    %c0_9 = arith.constant 0 : index
    %c1 = arith.constant 1 : index
    %c0_10 = arith.constant 0 : index
    %8 = vector.load %arg5[%c0_9, %c1, %c0_10] : memref<6x16x128xf32, #tpu.memory_space<vmem>>, vector<6x15x128xf32>
    tpu.vector_store %arg5[%c0_9, %c1, %c0_10], %5 {strides = array<i32>} : memref<6x16x128xf32, #tpu.memory_space<vmem>>, vector<6x15x128xf32>,
    %c1_11 = arith.constant 1 : index
    %c0_12 = arith.constant 0 : index
    %c0_13 = arith.constant 0 : index
    %9 = vector.load %arg2[%c1_11, %c0_12, %c0_13] : memref<3x32x128xbf16, #tpu.memory_space<vmem>>, vector<1x32x128xbf16>
    %10 = vector.shape_cast %9 : vector<1x32x128xbf16> to vector<32x128xbf16>
    %cst_14 = arith.constant dense<0.000000e+00> : vector<6x16x128xf32>
    %11 = tpu.matmul %1, %10, %cst_14 {dimension_numbers = #tpu.dot_dimension_numbers<[2], [0], [0, 1], [1], [0, 0, 0, 1, 1, 1], [], []>} : vector<6x16x32xbf16>, vector<32x128xbf16>, vector<6x16x128xf32> -> vector<6x16x128xf32>
    %c0_15 = arith.constant 0 : index
    %c0_16 = arith.constant 0 : index
    %c0_17 = arith.constant 0 : index
    %12 = vector.load %arg5[%c0_15, %c0_16, %c0_17] : memref<6x16x128xf32, #tpu.memory_space<vmem>>, vector<6x16x128xf32>
    %13 = arith.addf %12, %11 : vector<6x16x128xf32>
    %c0_18 = arith.constant 0 : index
    %c0_19 = arith.constant 0 : index
    %c0_20 = arith.constant 0 : index
    %14 = vector.load %arg5[%c0_18, %c0_19, %c0_20] : memref<6x16x128xf32, #tpu.memory_space<vmem>>, vector<6x16x128xf32>
    tpu.vector_store %arg5[%c0_18, %c0_19, %c0_20], %13 {strides = array<i32>} : memref<6x16x128xf32, #tpu.memory_space<vmem>>, vector<6x16x128xf32>,
    %c2 = arith.constant 2 : index
    %c0_21 = arith.constant 0 : index
    %c0_22 = arith.constant 0 : index
    %15 = vector.load %arg2[%c2, %c0_21, %c0_22] : memref<3x32x128xbf16, #tpu.memory_space<vmem>>, vector<1x32x128xbf16>
    %16 = vector.shape_cast %15 : vector<1x32x128xbf16> to vector<32x128xbf16>
    %cst_23 = arith.constant dense<0.000000e+00> : vector<6x16x128xf32>
    %17 = tpu.matmul %1, %16, %cst_23 {dimension_numbers = #tpu.dot_dimension_numbers<[2], [0], [0, 1], [1], [0, 0, 0, 1, 1, 1], [], []>} : vector<6x16x32xbf16>, vector<32x128xbf16>, vector<6x16x128xf32> -> vector<6x16x128xf32>
    %18 = vector.extract_strided_slice %17 {offsets = [0, 1, 0], sizes = [6, 15, 128], strides = [1, 1, 1]} : vector<6x16x128xf32> to vector<6x15x128xf32>
    %c0_24 = arith.constant 0 : index
    %c0_25 = arith.constant 0 : index
    %c0_26 = arith.constant 0 : index
    %19 = vector.load %arg5[%c0_24, %c0_25, %c0_26] : memref<6x16x128xf32, #tpu.memory_space<vmem>>, vector<6x15x128xf32>
    %20 = arith.addf %19, %18 : vector<6x15x128xf32>
    %c0_27 = arith.constant 0 : index
    %c0_28 = arith.constant 0 : index
    %c0_29 = arith.constant 0 : index
    %21 = vector.load %arg5[%c0_27, %c0_28, %c0_29] : memref<6x16x128xf32, #tpu.memory_space<vmem>>, vector<6x15x128xf32>
    tpu.vector_store %arg5[%c0_27, %c0_28, %c0_29], %20 {strides = array<i32>} : memref<6x16x128xf32, #tpu.memory_space<vmem>>, vector<6x15x128xf32>,
    %c0_30 = arith.constant 0 : index
    %c0_31 = arith.constant 0 : index
    %c0_32 = arith.constant 0 : index
    %22 = vector.load %arg5[%c0_30, %c0_31, %c0_32] : memref<6x16x128xf32, #tpu.memory_space<vmem>>, vector<6x16x128xf32>
    %cst_33 = arith.constant dense<0xFF800000> : vector<6x128xf32>
    %23 = vector.multi_reduction <maximumf>, %22, %cst_33 [1] : vector<6x16x128xf32> to vector<6x128xf32>
    %c0_34 = arith.constant 0 : index
    %c0_35 = arith.constant 0 : index
    %24 = vector.load %arg3[%c0_34, %c0_35] : memref<1x128xf32, #tpu.memory_space<vmem>>, vector<1x128xf32>
    %25 = vector.broadcast %24 : vector<1x128xf32> to vector<6x128xf32>
    %26 = arith.addf %23, %25 : vector<6x128xf32>
    %cst_36 = arith.constant 0.000000e+00 : f32
    %27 = vector.broadcast %cst_36 : f32 to vector<6x128xf32>
    %28 = arith.maximumf %26, %27 : vector<6x128xf32>
    %c0_37 = arith.constant 0 : index
    %c0_38 = arith.constant 0 : index
    %29 = vector.load %arg4[%c0_37, %c0_38] : memref<6x128xf32, #tpu.memory_space<vmem>>, vector<6x128xf32>
    tpu.vector_store %arg4[%c0_37, %c0_38], %28 {strides = array<i32>} : memref<6x128xf32, #tpu.memory_space<vmem>>, vector<6x128xf32>,
    return
  }
  func.func @transform_0(%arg0: i32) -> (i32, i32, i32) {
    %c0_i32 = arith.constant 0 : i32
    %c0_i32_0 = arith.constant 0 : i32
    %c0_i32_1 = arith.constant 0 : i32
    return %arg0, %c0_i32, %c0_i32_0 : i32, i32, i32
  }
  func.func @transform_1(%arg0: i32) -> (i32, i32, i32) {
    %c0_i32 = arith.constant 0 : i32
    %c0_i32_0 = arith.constant 0 : i32
    %c0_i32_1 = arith.constant 0 : i32
    %c0_i32_2 = arith.constant 0 : i32
    return %c0_i32, %c0_i32_0, %c0_i32_1 : i32, i32, i32
  }
  func.func @transform_2(%arg0: i32) -> (i32, i32) {
    %c0_i32 = arith.constant 0 : i32
    %c0_i32_0 = arith.constant 0 : i32
    %c0_i32_1 = arith.constant 0 : i32
    return %c0_i32, %c0_i32_0 : i32, i32
  }
  func.func @transform_3(%arg0: i32) -> (i32, i32) {
    %c0_i32 = arith.constant 0 : i32
    %c0_i32_0 = arith.constant 0 : i32
    return %arg0, %c0_i32 : i32, i32
  }
}

</mosaic_0001>

<llo_original>
// kernel: tpu_custom_call.1
$region0: #{tpu_custom_call.1}
  #allocation0 [shape = 'u32[]', space=smem, size = 0x4, offset = 0x4, fixed_abs, tag = 'smem constant byte address 0x4 - core index']
  #allocation1 [shape = 'u32[144,128]{1,0:T(1,128)}', space=vmem, size = 0x12000, scoped, tag = 'internal scratch']
  #allocation2 [shape = 'f32[6,16,128]{2,1,0:T(8,128)}', space=vmem, size = 0xc000, scoped, tag = 'scratch operand']
  %s0 = inlined_call_operand.hbm [shape: f32[6,16,32], index: 0, kind: input, shape index: {}]
  %s1 = inlined_call_operand.hbm [shape: bf16[3,32,128], index: 1, kind: input, shape index: {}]
  %s2 = inlined_call_operand.vmem [shape: f32[1,128], index: 2, kind: input, shape index: {}]
  %s3 = inlined_call_operand.hbm [shape: f32[6,128], index: 3, kind: output, shape index: {}]
  %s4 = sld [smem:[#allocation0]]
  $region30: #{tpu_custom_call.1} parent=0
    _
  %s6 = ssub.s32 1, %s4
  %s7 = scalar_select 0, %s6, %s4
  $region1: #{tpu_custom_call.1} parent=0
    #allocation3 [shape = 'u8[49152]{0}', space=vmem, size = 0xc000, scoped, tag = 'input window, operand 0, single buffered']
    #allocation4 [shape = 's32[1]{0}', space=sflag, size = 0x4, scoped, tag = 'scoped memory for tpu_custom_call.1']
    #allocation5 [shape = 's32[1]{0}', space=sflag, size = 0x4, scoped, tag = 'scoped memory for tpu_custom_call.1']
    #allocation6 [shape = 'u8[24576]{0}', space=vmem, size = 0x6000, scoped, tag = 'input window, operand 1, single buffered']
    #allocation7 [shape = 's32[1]{0}', space=sflag, size = 0x4, scoped, tag = 'scoped memory for tpu_custom_call.1']
    #allocation8 [shape = 'u8[4096]{0}', space=vmem, size = 0x1000, scoped, tag = 'output window, operand 0, single buffered']
    %8 = vsyncpa [#allocation4], 0
    %9 = vsyncpa [#allocation7], 0
    %10 = vsyncpa [#allocation5], 0
    // Predicated region
    $region2: #{tpu_custom_call.1} parent=1 // pred_check
      _
    $region3: #{tpu_custom_call.1} parent=1 // pred_check_branch
      %12 = sbr.rel (0) target = $region5
    $region4: #{tpu_custom_call.1} parent=1 // pred_region
      %s14 = ssub.s32 1536, 1536
      %15 = vsyncadd [#allocation4], %s14
      %s16 = sshll.u32 [#allocation3], 4
      %s17 = int_to_ptr.vmem [resolvable:$true] %s16
      %22 = dma.hbm_to_vmem [thread:$0]  %s0, 1536, %s17, [#allocation4], 128, 128, 8
    $region5: #{tpu_custom_call.1} parent=1 // pred_fallthru
      _
    // Predicated region
    $region6: #{tpu_custom_call.1} parent=1 // pred_check
      _
    $region7: #{tpu_custom_call.1} parent=1 // pred_check_branch
      %24 = sbr.rel (0) target = $region9
    $region8: #{tpu_custom_call.1} parent=1 // pred_region
      %s26 = ssub.s32 768, 768
      %27 = vsyncadd [#allocation7], %s26
      %s28 = sshll.u32 [#allocation6], 4
      %s29 = int_to_ptr.vmem [resolvable:$true] %s28
      %34 = dma.hbm_to_vmem [thread:$0]  %s1, 768, %s29, [#allocation7], 64, 64, 4
    $region9: #{tpu_custom_call.1} parent=1 // pred_fallthru
      _
    // Predicated region
    $region10: #{tpu_custom_call.1} parent=1 // pred_check
      _
    $region11: #{tpu_custom_call.1} parent=1 // pred_check_branch
      %36 = sbr.rel (0) target = $region13
    $region12: #{tpu_custom_call.1} parent=1 // pred_region
      _
    $region13: #{tpu_custom_call.1} parent=1 // pred_fallthru
      _
    // Predicated region
    $region14: #{tpu_custom_call.1} parent=1 // pred_check
      _
    $region15: #{tpu_custom_call.1} parent=1 // pred_check_branch
      %38 = sbr.rel (0) target = $region17
    $region16: #{tpu_custom_call.1} parent=1 // pred_region
      %39 = dma.done [#allocation4], 1536
    $region17: #{tpu_custom_call.1} parent=1 // pred_fallthru
      _
    // Predicated region
    $region18: #{tpu_custom_call.1} parent=1 // pred_check
      _
    $region19: #{tpu_custom_call.1} parent=1 // pred_check_branch
      %41 = sbr.rel (0) target = $region21
    $region20: #{tpu_custom_call.1} parent=1 // pred_region
      %42 = dma.done [#allocation7], 768
    $region21: #{tpu_custom_call.1} parent=1 // pred_fallthru
      _
    %v44 = vld [vmem:[#allocation3] sm:$0xff]
    %v45 = vld [vmem:[#allocation3 + $0x8] sm:$0xff]
    %v46 = vld [vmem:[#allocation3 + $0x10] sm:$0xff]
    %v47 = vld [vmem:[#allocation3 + $0x18] sm:$0xff]
    %v48 = vld [vmem:[#allocation3 + $0x20] sm:$0xff]
    %v49 = vld [vmem:[#allocation3 + $0x28] sm:$0xff]
    %v50 = vld [vmem:[#allocation3 + $0x30] sm:$0xff]
    %v51 = vld [vmem:[#allocation3 + $0x38] sm:$0xff]
    %v52 = vld [vmem:[#allocation3 + $0x40] sm:$0xff]
    %v53 = vld [vmem:[#allocation3 + $0x48] sm:$0xff]
    %v54 = vld [vmem:[#allocation3 + $0x50] sm:$0xff]
    %v55 = vld [vmem:[#allocation3 + $0x58] sm:$0xff]
    %v56 = vpack.c.bf16 %v45, %v44
    %v57 = vpack.c.bf16 %v47, %v46
    %v58 = vpack.c.bf16 %v49, %v48
    %v59 = vpack.c.bf16 %v51, %v50
    %v60 = vpack.c.bf16 %v53, %v52
    %v61 = vpack.c.bf16 %v55, %v54
    %v62 = vld [vmem:[#allocation6] sm:$0xf]
    %v63 = vld [vmem:[#allocation6 + $0x4] sm:$0xf]
    %v64 = vld [vmem:[#allocation6 + $0x8] sm:$0xf]
    %v65 = vld [vmem:[#allocation6 + $0xc] sm:$0xf]
    %v70 = vunpack.c.l.b16 %v62
    %v71 = vunpack.c.l.b16 %v63
    %v72 = vunpack.c.l.b16 %v64
    %v73 = vunpack.c.l.b16 %v65
    %v74 = vpack.c.b16 %v71, %v70
    %v75 = vpack.c.b16 %v73, %v72
    %vm78 = vcmask 261120
    %v80 = vsel %vm78, %v56, 0
    %v83 = vsel %vm78, %v57, 0
    %v86 = vsel %vm78, %v58, 0
    %v89 = vsel %vm78, %v59, 0
    %v92 = vsel %vm78, %v60, 0
    %v95 = vsel %vm78, %v61, 0
    %97 = vmatprep.subr.bf16.mxu0 0
    %98 = vmatpush1.bf16.msra.mxu0 %v74
    %99 = vmatprep.subr.bf16.mxu0 0
    %100 = vmatpush1.bf16.msra.mxu0 %v75
    %101 = vmatprep.subr.bf16.mxu0 0
    %102 = vmatpush1.bf16.msra.mxu0 0
    %103 = vmatprep.subr.bf16.mxu0 0
    %104 = vmatpush1.bf16.msra.mxu0 0
    %105 = vmatprep.subr.bf16.mxu0 0
    %106 = vmatpush1.bf16.msra.mxu0 0
    %107 = vmatprep.subr.bf16.mxu0 0
    %108 = vmatpush1.bf16.msra.mxu0 0
    %109 = vmatprep.subr.bf16.mxu0 0
    %110 = vmatpush1.bf16.msra.mxu0 0
    %111 = vmatprep.subr.bf16.mxu0 0
    %112 = vmatpush1.bf16.msra.mxu0 0
    %113 = vmatprep.subr.bf16.mxu0 0
    %114 = vmatpush1.bf16.msra.mxu0 0
    %115 = vmatprep.subr.bf16.mxu0 0
    %116 = vmatpush1.bf16.msra.mxu0 0
    %117 = vmatprep.subr.bf16.mxu0 0
    %118 = vmatpush1.bf16.msra.mxu0 0
    %119 = vmatprep.subr.bf16.mxu0 0
    %120 = vmatpush1.bf16.msra.mxu0 0
    %121 = vmatprep.subr.bf16.mxu0 0
    %122 = vmatpush1.bf16.msra.mxu0 0
    %123 = vmatprep.subr.bf16.mxu0 0
    %124 = vmatpush1.bf16.msra.mxu0 0
    %125 = vmatprep.subr.bf16.mxu0 0
    %126 = vmatpush1.bf16.msra.mxu0 0
    %127 = vmatprep.subr.bf16.mxu0 0
    %128 = vmatpush1.bf16.msra.mxu0 0
    %129 = vmatprep.mubr.bf16.mxu0 0
    %130 = vmatmul.mubr.bf16.gmra.mrb[0].mxu0 %v80
    %v131 = vpop.f32.mrb[0].mxu0
    %v132 = vadd.f32 0.0, %v131
    %v133 = vpop.f32.mrb[0].mxu0
    %v134 = vpop.f32.mrb[0].mxu0
    %v135 = vadd.f32 0.0, %v134
    %v136 = vpop.f32.mrb[0].mxu0
    %137 = vmatprep.mubr.bf16.mxu0 0
    %138 = vmatmul.mubr.bf16.gmra.mrb[0].mxu0 %v83
    %v139 = vpop.f32.mrb[0].mxu0
    %v140 = vadd.f32 0.0, %v139
    %v141 = vpop.f32.mrb[0].mxu0
    %v142 = vpop.f32.mrb[0].mxu0
    %v143 = vadd.f32 0.0, %v142
    %v144 = vpop.f32.mrb[0].mxu0
    %145 = vmatprep.mubr.bf16.mxu0 0
    %146 = vmatmul.mubr.bf16.gmra.mrb[0].mxu0 %v86
    %v147 = vpop.f32.mrb[0].mxu0
    %v148 = vadd.f32 0.0, %v147
    %v149 = vpop.f32.mrb[0].mxu0
    %v150 = vpop.f32.mrb[0].mxu0
    %v151 = vadd.f32 0.0, %v150
    %v152 = vpop.f32.mrb[0].mxu0
    %153 = vmatprep.mubr.bf16.mxu0 0
    %154 = vmatmul.mubr.bf16.gmra.mrb[0].mxu0 %v89
    %v155 = vpop.f32.mrb[0].mxu0
    %v156 = vadd.f32 0.0, %v155
    %v157 = vpop.f32.mrb[0].mxu0
    %v158 = vpop.f32.mrb[0].mxu0
    %v159 = vadd.f32 0.0, %v158
    %v160 = vpop.f32.mrb[0].mxu0
    %161 = vmatprep.mubr.bf16.mxu0 0
    %162 = vmatmul.mubr.bf16.gmra.mrb[0].mxu0 %v92
    %v163 = vpop.f32.mrb[0].mxu0
    %v164 = vadd.f32 0.0, %v163
    %v165 = vpop.f32.mrb[0].mxu0
    %v166 = vpop.f32.mrb[0].mxu0
    %v167 = vadd.f32 0.0, %v166
    %v168 = vpop.f32.mrb[0].mxu0
    %169 = vmatprep.mubr.bf16.mxu0 0
    %170 = vmatmul.mubr.bf16.gmra.mrb[0].mxu0 %v95
    %v171 = vpop.f32.mrb[0].mxu0
    %v172 = vadd.f32 0.0, %v171
    %v173 = vpop.f32.mrb[0].mxu0
    %v174 = vpop.f32.mrb[0].mxu0
    %v175 = vadd.f32 0.0, %v174
    %v176 = vpop.f32.mrb[0].mxu0
    %177 = vdwg.mxu0
    %178 = vst [vmem:[#allocation2] sm:$0x1] 0.0
    %179 = vst [vmem:[#allocation2 + $0x10] sm:$0x1] 0.0
    %180 = vst [vmem:[#allocation2 + $0x20] sm:$0x1] 0.0
    %181 = vst [vmem:[#allocation2 + $0x30] sm:$0x1] 0.0
    %182 = vst [vmem:[#allocation2 + $0x40] sm:$0x1] 0.0
    %183 = vst [vmem:[#allocation2 + $0x50] sm:$0x1] 0.0
    %184 = vst [vmem:[#allocation2 + $0x1] sm:$0xff] %v132
    %185 = vst [vmem:[#allocation2 + $0x9] sm:$0x7f] %v135
    %186 = vst [vmem:[#allocation2 + $0x11] sm:$0xff] %v140
    %187 = vst [vmem:[#allocation2 + $0x19] sm:$0x7f] %v143
    %188 = vst [vmem:[#allocation2 + $0x21] sm:$0xff] %v148
    %189 = vst [vmem:[#allocation2 + $0x29] sm:$0x7f] %v151
    %190 = vst [vmem:[#allocation2 + $0x31] sm:$0xff] %v156
    %191 = vst [vmem:[#allocation2 + $0x39] sm:$0x7f] %v159
    %192 = vst [vmem:[#allocation2 + $0x41] sm:$0xff] %v164
    %193 = vst [vmem:[#allocation2 + $0x49] sm:$0x7f] %v167
    %194 = vst [vmem:[#allocation2 + $0x51] sm:$0xff] %v172
    %195 = vst [vmem:[#allocation2 + $0x59] sm:$0x7f] %v175
    %s196 = scalar_lea.vmem [#allocation6], 16
    %v197 = vld [vmem:[%s196] sm:$0xf]
    %v198 = vld [vmem:[%s196 + $0x4] sm:$0xf]
    %v199 = vld [vmem:[%s196 + $0x8] sm:$0xf]
    %v200 = vld [vmem:[%s196 + $0xc] sm:$0xf]
    %v205 = vunpack.c.l.b16 %v197
    %v206 = vunpack.c.l.b16 %v198
    %v207 = vunpack.c.l.b16 %v199
    %v208 = vunpack.c.l.b16 %v200
    %v209 = vpack.c.b16 %v206, %v205
    %v210 = vpack.c.b16 %v208, %v207
    %213 = vmatprep.subr.bf16.mxu0 0
    %214 = vmatpush1.bf16.msra.mxu0 %v209
    %215 = vmatprep.subr.bf16.mxu0 0
    %216 = vmatpush1.bf16.msra.mxu0 %v210
    %217 = vmatprep.subr.bf16.mxu0 0
    %218 = vmatpush1.bf16.msra.mxu0 0
    %219 = vmatprep.subr.bf16.mxu0 0
    %220 = vmatpush1.bf16.msra.mxu0 0
    %221 = vmatprep.subr.bf16.mxu0 0
    %222 = vmatpush1.bf16.msra.mxu0 0
    %223 = vmatprep.subr.bf16.mxu0 0
    %224 = vmatpush1.bf16.msra.mxu0 0
    %225 = vmatprep.subr.bf16.mxu0 0
    %226 = vmatpush1.bf16.msra.mxu0 0
    %227 = vmatprep.subr.bf16.mxu0 0
    %228 = vmatpush1.bf16.msra.mxu0 0
    %229 = vmatprep.subr.bf16.mxu0 0
    %230 = vmatpush1.bf16.msra.mxu0 0
    %231 = vmatprep.subr.bf16.mxu0 0
    %232 = vmatpush1.bf16.msra.mxu0 0
    %233 = vmatprep.subr.bf16.mxu0 0
    %234 = vmatpush1.bf16.msra.mxu0 0
    %235 = vmatprep.subr.bf16.mxu0 0
    %236 = vmatpush1.bf16.msra.mxu0 0
    %237 = vmatprep.subr.bf16.mxu0 0
    %238 = vmatpush1.bf16.msra.mxu0 0
    %239 = vmatprep.subr.bf16.mxu0 0
    %240 = vmatpush1.bf16.msra.mxu0 0
    %241 = vmatprep.subr.bf16.mxu0 0
    %242 = vmatpush1.bf16.msra.mxu0 0
    %243 = vmatprep.subr.bf16.mxu0 0
    %244 = vmatpush1.bf16.msra.mxu0 0
    %245 = vmatprep.mubr.bf16.mxu0 0
    %246 = vmatmul.mubr.bf16.gmra.mrb[0].mxu0 %v80
    %v247 = vpop.f32.mrb[0].mxu0
    %v248 = vadd.f32 0.0, %v247
    %v249 = vpop.f32.mrb[0].mxu0
    %v250 = vpop.f32.mrb[0].mxu0
    %v251 = vadd.f32 0.0, %v250
    %v252 = vpop.f32.mrb[0].mxu0
    %253 = vmatprep.mubr.bf16.mxu0 0
    %254 = vmatmul.mubr.bf16.gmra.mrb[0].mxu0 %v83
    %v255 = vpop.f32.mrb[0].mxu0
    %v256 = vadd.f32 0.0, %v255
    %v257 = vpop.f32.mrb[0].mxu0
    %v258 = vpop.f32.mrb[0].mxu0
    %v259 = vadd.f32 0.0, %v258
    %v260 = vpop.f32.mrb[0].mxu0
    %261 = vmatprep.mubr.bf16.mxu0 0
    %262 = vmatmul.mubr.bf16.gmra.mrb[0].mxu0 %v86
    %v263 = vpop.f32.mrb[0].mxu0
    %v264 = vadd.f32 0.0, %v263
    %v265 = vpop.f32.mrb[0].mxu0
    %v266 = vpop.f32.mrb[0].mxu0
    %v267 = vadd.f32 0.0, %v266
    %v268 = vpop.f32.mrb[0].mxu0
    %269 = vmatprep.mubr.bf16.mxu0 0
    %270 = vmatmul.mubr.bf16.gmra.mrb[0].mxu0 %v89
    %v271 = vpop.f32.mrb[0].mxu0
    %v272 = vadd.f32 0.0, %v271
    %v273 = vpop.f32.mrb[0].mxu0
    %v274 = vpop.f32.mrb[0].mxu0
    %v275 = vadd.f32 0.0, %v274
    %v276 = vpop.f32.mrb[0].mxu0
    %277 = vmatprep.mubr.bf16.mxu0 0
    %278 = vmatmul.mubr.bf16.gmra.mrb[0].mxu0 %v92
    %v279 = vpop.f32.mrb[0].mxu0
    %v280 = vadd.f32 0.0, %v279
    %v281 = vpop.f32.mrb[0].mxu0
    %v282 = vpop.f32.mrb[0].mxu0
    %v283 = vadd.f32 0.0, %v282
    %v284 = vpop.f32.mrb[0].mxu0
    %285 = vmatprep.mubr.bf16.mxu0 0
    %286 = vmatmul.mubr.bf16.gmra.mrb[0].mxu0 %v95
    %v287 = vpop.f32.mrb[0].mxu0
    %v288 = vadd.f32 0.0, %v287
    %v289 = vpop.f32.mrb[0].mxu0
    %v290 = vpop.f32.mrb[0].mxu0
    %v291 = vadd.f32 0.0, %v290
    %v292 = vpop.f32.mrb[0].mxu0
    %293 = vdwg.mxu0
    %v294 = vld [vmem:[#allocation2] sm:$0xff]
    %v295 = vld [vmem:[#allocation2 + $0x8] sm:$0xff]
    %v296 = vld [vmem:[#allocation2 + $0x10] sm:$0xff]
    %v297 = vld [vmem:[#allocation2 + $0x18] sm:$0xff]
    %v298 = vld [vmem:[#allocation2 + $0x20] sm:$0xff]
    %v299 = vld [vmem:[#allocation2 + $0x28] sm:$0xff]
    %v300 = vld [vmem:[#allocation2 + $0x30] sm:$0xff]
    %v301 = vld [vmem:[#allocation2 + $0x38] sm:$0xff]
    %v302 = vld [vmem:[#allocation2 + $0x40] sm:$0xff]
    %v303 = vld [vmem:[#allocation2 + $0x48] sm:$0xff]
    %v304 = vld [vmem:[#allocation2 + $0x50] sm:$0xff]
    %v305 = vld [vmem:[#allocation2 + $0x58] sm:$0xff]
    %v306 = vadd.f32 %v294, %v248
    %v307 = vadd.f32 %v295, %v251
    %v308 = vadd.f32 %v296, %v256
    %v309 = vadd.f32 %v297, %v259
    %v310 = vadd.f32 %v298, %v264
    %v311 = vadd.f32 %v299, %v267
    %v312 = vadd.f32 %v300, %v272
    %v313 = vadd.f32 %v301, %v275
    %v314 = vadd.f32 %v302, %v280
    %v315 = vadd.f32 %v303, %v283
    %v316 = vadd.f32 %v304, %v288
    %v317 = vadd.f32 %v305, %v291
    %318 = vst [vmem:[#allocation2] sm:$0xff] %v306
    %319 = vst [vmem:[#allocation2 + $0x8] sm:$0xff] %v307
    %320 = vst [vmem:[#allocation2 + $0x10] sm:$0xff] %v308
    %321 = vst [vmem:[#allocation2 + $0x18] sm:$0xff] %v309
    %322 = vst [vmem:[#allocation2 + $0x20] sm:$0xff] %v310
    %323 = vst [vmem:[#allocation2 + $0x28] sm:$0xff] %v311
    %324 = vst [vmem:[#allocation2 + $0x30] sm:$0xff] %v312
    %325 = vst [vmem:[#allocation2 + $0x38] sm:$0xff] %v313
    %326 = vst [vmem:[#allocation2 + $0x40] sm:$0xff] %v314
    %327 = vst [vmem:[#allocation2 + $0x48] sm:$0xff] %v315
    %328 = vst [vmem:[#allocation2 + $0x50] sm:$0xff] %v316
    %329 = vst [vmem:[#allocation2 + $0x58] sm:$0xff] %v317
    %s330 = scalar_lea.vmem [#allocation6], 32
    %v331 = vld [vmem:[%s330] sm:$0xf]
    %v332 = vld [vmem:[%s330 + $0x4] sm:$0xf]
    %v333 = vld [vmem:[%s330 + $0x8] sm:$0xf]
    %v334 = vld [vmem:[%s330 + $0xc] sm:$0xf]
    %v339 = vunpack.c.l.b16 %v331
    %v340 = vunpack.c.l.b16 %v332
    %v341 = vunpack.c.l.b16 %v333
    %v342 = vunpack.c.l.b16 %v334
    %v343 = vpack.c.b16 %v340, %v339
    %v344 = vpack.c.b16 %v342, %v341
    %347 = vmatprep.subr.bf16.mxu0 0
    %348 = vmatpush1.bf16.msra.mxu0 %v343
    %349 = vmatprep.subr.bf16.mxu0 0
    %350 = vmatpush1.bf16.msra.mxu0 %v344
    %351 = vmatprep.subr.bf16.mxu0 0
    %352 = vmatpush1.bf16.msra.mxu0 0
    %353 = vmatprep.subr.bf16.mxu0 0
    %354 = vmatpush1.bf16.msra.mxu0 0
    %355 = vmatprep.subr.bf16.mxu0 0
    %356 = vmatpush1.bf16.msra.mxu0 0
    %357 = vmatprep.subr.bf16.mxu0 0
    %358 = vmatpush1.bf16.msra.mxu0 0
    %359 = vmatprep.subr.bf16.mxu0 0
    %360 = vmatpush1.bf16.msra.mxu0 0
    %361 = vmatprep.subr.bf16.mxu0 0
    %362 = vmatpush1.bf16.msra.mxu0 0
    %363 = vmatprep.subr.bf16.mxu0 0
    %364 = vmatpush1.bf16.msra.mxu0 0
    %365 = vmatprep.subr.bf16.mxu0 0
    %366 = vmatpush1.bf16.msra.mxu0 0
    %367 = vmatprep.subr.bf16.mxu0 0
    %368 = vmatpush1.bf16.msra.mxu0 0
    %369 = vmatprep.subr.bf16.mxu0 0
    %370 = vmatpush1.bf16.msra.mxu0 0
    %371 = vmatprep.subr.bf16.mxu0 0
    %372 = vmatpush1.bf16.msra.mxu0 0
    %373 = vmatprep.subr.bf16.mxu0 0
    %374 = vmatpush1.bf16.msra.mxu0 0
    %375 = vmatprep.subr.bf16.mxu0 0
    %376 = vmatpush1.bf16.msra.mxu0 0
    %377 = vmatprep.subr.bf16.mxu0 0
    %378 = vmatpush1.bf16.msra.mxu0 0
    %379 = vmatprep.mubr.bf16.mxu0 0
    %380 = vmatmul.mubr.bf16.gmra.mrb[0].mxu0 %v80
    %v381 = vpop.f32.mrb[0].mxu0
    %v382 = vadd.f32 0.0, %v381
    %v383 = vpop.f32.mrb[0].mxu0
    %v384 = vpop.f32.mrb[0].mxu0
    %v385 = vadd.f32 0.0, %v384
    %v386 = vpop.f32.mrb[0].mxu0
    %387 = vmatprep.mubr.bf16.mxu0 0
    %388 = vmatmul.mubr.bf16.gmra.mrb[0].mxu0 %v83
    %v389 = vpop.f32.mrb[0].mxu0
    %v390 = vadd.f32 0.0, %v389
    %v391 = vpop.f32.mrb[0].mxu0
    %v392 = vpop.f32.mrb[0].mxu0
    %v393 = vadd.f32 0.0, %v392
    %v394 = vpop.f32.mrb[0].mxu0
    %395 = vmatprep.mubr.bf16.mxu0 0
    %396 = vmatmul.mubr.bf16.gmra.mrb[0].mxu0 %v86
    %v397 = vpop.f32.mrb[0].mxu0
    %v398 = vadd.f32 0.0, %v397
    %v399 = vpop.f32.mrb[0].mxu0
    %v400 = vpop.f32.mrb[0].mxu0
    %v401 = vadd.f32 0.0, %v400
    %v402 = vpop.f32.mrb[0].mxu0
    %403 = vmatprep.mubr.bf16.mxu0 0
    %404 = vmatmul.mubr.bf16.gmra.mrb[0].mxu0 %v89
    %v405 = vpop.f32.mrb[0].mxu0
    %v406 = vadd.f32 0.0, %v405
    %v407 = vpop.f32.mrb[0].mxu0
    %v408 = vpop.f32.mrb[0].mxu0
    %v409 = vadd.f32 0.0, %v408
    %v410 = vpop.f32.mrb[0].mxu0
    %411 = vmatprep.mubr.bf16.mxu0 0
    %412 = vmatmul.mubr.bf16.gmra.mrb[0].mxu0 %v92
    %v413 = vpop.f32.mrb[0].mxu0
    %v414 = vadd.f32 0.0, %v413
    %v415 = vpop.f32.mrb[0].mxu0
    %v416 = vpop.f32.mrb[0].mxu0
    %v417 = vadd.f32 0.0, %v416
    %v418 = vpop.f32.mrb[0].mxu0
    %419 = vmatprep.mubr.bf16.mxu0 0
    %420 = vmatmul.mubr.bf16.gmra.mrb[0].mxu0 %v95
    %v421 = vpop.f32.mrb[0].mxu0
    %v422 = vadd.f32 0.0, %v421
    %v423 = vpop.f32.mrb[0].mxu0
    %v424 = vpop.f32.mrb[0].mxu0
    %v425 = vadd.f32 0.0, %v424
    %v426 = vpop.f32.mrb[0].mxu0
    %427 = vdwg.mxu0
    %v428 = vld [vmem:[#allocation2] sm:$0xff]
    %v429 = vld [vmem:[#allocation2 + $0x8] sm:$0x7f]
    %v430 = vld [vmem:[#allocation2 + $0x10] sm:$0xff]
    %v431 = vld [vmem:[#allocation2 + $0x18] sm:$0x7f]
    %v432 = vld [vmem:[#allocation2 + $0x20] sm:$0xff]
    %v433 = vld [vmem:[#allocation2 + $0x28] sm:$0x7f]
    %v434 = vld [vmem:[#allocation2 + $0x30] sm:$0xff]
    %v435 = vld [vmem:[#allocation2 + $0x38] sm:$0x7f]
    %v436 = vld [vmem:[#allocation2 + $0x40] sm:$0xff]
    %v437 = vld [vmem:[#allocation2 + $0x48] sm:$0x7f]
    %v438 = vld [vmem:[#allocation2 + $0x50] sm:$0xff]
    %v439 = vld [vmem:[#allocation2 + $0x58] sm:$0x7f]
    %vm452 = vcmask 1046528
    %v453 = vrot.slane %v382, 1
    %v454 = vrot.slane %v385, 1
    %v455 = vsel %vm452, %v453, %v454
    %v456 = vrot.slane %v390, 1
    %v457 = vrot.slane %v393, 1
    %v458 = vsel %vm452, %v456, %v457
    %v459 = vrot.slane %v398, 1
    %v460 = vrot.slane %v401, 1
    %v461 = vsel %vm452, %v459, %v460
    %v462 = vrot.slane %v406, 1
    %v463 = vrot.slane %v409, 1
    %v464 = vsel %vm452, %v462, %v463
    %v465 = vrot.slane %v414, 1
    %v466 = vrot.slane %v417, 1
    %v467 = vsel %vm452, %v465, %v466
    %v468 = vrot.slane %v422, 1
    %v469 = vrot.slane %v425, 1
    %v470 = vsel %vm452, %v468, %v469
    %v483 = vadd.f32 %v428, %v455
    %v484 = vadd.f32 %v429, %v454
    %v485 = vadd.f32 %v430, %v458
    %v486 = vadd.f32 %v431, %v457
    %v487 = vadd.f32 %v432, %v461
    %v488 = vadd.f32 %v433, %v460
    %v489 = vadd.f32 %v434, %v464
    %v490 = vadd.f32 %v435, %v463
    %v491 = vadd.f32 %v436, %v467
    %v492 = vadd.f32 %v437, %v466
    %v493 = vadd.f32 %v438, %v470
    %v494 = vadd.f32 %v439, %v469
    %495 = vst [vmem:[#allocation2] sm:$0xff] %v483
    %496 = vst [vmem:[#allocation2 + $0x8] sm:$0x7f] %v484
    %497 = vst [vmem:[#allocation2 + $0x10] sm:$0xff] %v485
    %498 = vst [vmem:[#allocation2 + $0x18] sm:$0x7f] %v486
    %499 = vst [vmem:[#allocation2 + $0x20] sm:$0xff] %v487
    %500 = vst [vmem:[#allocation2 + $0x28] sm:$0x7f] %v488
    %501 = vst [vmem:[#allocation2 + $0x30] sm:$0xff] %v489
    %502 = vst [vmem:[#allocation2 + $0x38] sm:$0x7f] %v490
    %503 = vst [vmem:[#allocation2 + $0x40] sm:$0xff] %v491
    %504 = vst [vmem:[#allocation2 + $0x48] sm:$0x7f] %v492
    %505 = vst [vmem:[#allocation2 + $0x50] sm:$0xff] %v493
    %506 = vst [vmem:[#allocation2 + $0x58] sm:$0x7f] %v494
    %v507 = vld [vmem:[#allocation2] sm:$0xff]
    %v508 = vld [vmem:[#allocation2 + $0x8] sm:$0xff]
    %v509 = vld [vmem:[#allocation2 + $0x10] sm:$0xff]
    %v510 = vld [vmem:[#allocation2 + $0x18] sm:$0xff]
    %v511 = vld [vmem:[#allocation2 + $0x20] sm:$0xff]
    %v512 = vld [vmem:[#allocation2 + $0x28] sm:$0xff]
    %v513 = vld [vmem:[#allocation2 + $0x30] sm:$0xff]
    %v514 = vld [vmem:[#allocation2 + $0x38] sm:$0xff]
    %v515 = vld [vmem:[#allocation2 + $0x40] sm:$0xff]
    %v516 = vld [vmem:[#allocation2 + $0x48] sm:$0xff]
    %v517 = vld [vmem:[#allocation2 + $0x50] sm:$0xff]
    %v518 = vld [vmem:[#allocation2 + $0x58] sm:$0xff]
    %v519 = vmax.f32 %v507, %v508
    %v520 = vrot.slane %v519, 4
    %v521 = vmax.f32 %v519, %v520
    %v522 = vrot.slane %v521, 2
    %v523 = vmax.f32 %v521, %v522
    %v524 = vrot.slane %v523, 1
    %v525 = vmax.f32 %v523, %v524
    %v526 = vmax.f32 %v509, %v510
    %v527 = vrot.slane %v526, 4
    %v528 = vmax.f32 %v526, %v527
    %v529 = vrot.slane %v528, 2
    %v530 = vmax.f32 %v528, %v529
    %v531 = vrot.slane %v530, 1
    %v532 = vmax.f32 %v530, %v531
    %v533 = vmax.f32 %v511, %v512
    %v534 = vrot.slane %v533, 4
    %v535 = vmax.f32 %v533, %v534
    %v536 = vrot.slane %v535, 2
    %v537 = vmax.f32 %v535, %v536
    %v538 = vrot.slane %v537, 1
    %v539 = vmax.f32 %v537, %v538
    %v540 = vmax.f32 %v513, %v514
    %v541 = vrot.slane %v540, 4
    %v542 = vmax.f32 %v540, %v541
    %v543 = vrot.slane %v542, 2
    %v544 = vmax.f32 %v542, %v543
    %v545 = vrot.slane %v544, 1
    %v546 = vmax.f32 %v544, %v545
    %v547 = vmax.f32 %v515, %v516
    %v548 = vrot.slane %v547, 4
    %v549 = vmax.f32 %v547, %v548
    %v550 = vrot.slane %v549, 2
    %v551 = vmax.f32 %v549, %v550
    %v552 = vrot.slane %v551, 1
    %v553 = vmax.f32 %v551, %v552
    %v554 = vmax.f32 %v517, %v518
    %v555 = vrot.slane %v554, 4
    %v556 = vmax.f32 %v554, %v555
    %v557 = vrot.slane %v556, 2
    %v558 = vmax.f32 %v556, %v557
    %v559 = vrot.slane %v558, 1
    %v560 = vmax.f32 %v558, %v559
    %v561 = vld [vmem:[%s2] sm:$0x1]
    %v563 = vlaneseq
    %v564 = vshrl.u32 %v563, 7
    %v565 = vsub.s32 0, %v564
    %v566 = vrot.slane %v561, %v565
    %v568 = vadd.f32 %v525, %v566
    %v569 = vadd.f32 %v532, %v566
    %v570 = vadd.f32 %v539, %v566
    %v571 = vadd.f32 %v546, %v566
    %v572 = vadd.f32 %v553, %v566
    %v573 = vadd.f32 %v560, %v566
    %v574 = vmax.f32 %v568, 0.0
    %v575 = vmax.f32 %v569, 0.0
    %v576 = vmax.f32 %v570, 0.0
    %v577 = vmax.f32 %v571, 0.0
    %v578 = vmax.f32 %v572, 0.0
    %v579 = vmax.f32 %v573, 0.0
    %v586 = vrot.slane %v575, 7
    %vm587 = vcmask 1041409
    %v588 = vsel %vm587, %v586, %v574
    %v589 = vrot.slane %v576, 6
    %vm590 = vcmask 1042434
    %v591 = vsel %vm590, %v589, %v588
    %v592 = vrot.slane %v577, 5
    %vm593 = vcmask 1043459
    %v594 = vsel %vm593, %v592, %v591
    %v595 = vrot.slane %v578, 4
    %vm596 = vcmask 1044484
    %v597 = vsel %vm596, %v595, %v594
    %v598 = vrot.slane %v579, 3
    %vm599 = vcmask 1045509
    %v600 = vsel %vm599, %v598, %v597
    %602 = vst [vmem:[#allocation8] sm:$0x3f] %v600
    // Predicated region
    $region22: #{tpu_custom_call.1} parent=1 // pred_check
      _
    $region23: #{tpu_custom_call.1} parent=1 // pred_check_branch
      %604 = sbr.rel (0) target = $region25
    $region24: #{tpu_custom_call.1} parent=1 // pred_region
      %s606 = ssub.s32 128, 128
      %607 = vsyncadd [#allocation5], %s606
      %s609 = sshll.u32 [#allocation8], 4
      %s610 = int_to_ptr.vmem [resolvable:$true] %s609
      %612 = dma.vmem_to_hbm [thread:$0]  %s610, 128, %s3, [#allocation5]
    $region25: #{tpu_custom_call.1} parent=1 // pred_fallthru
      _
    // Predicated region
    $region26: #{tpu_custom_call.1} parent=1 // pred_check
      _
    $region27: #{tpu_custom_call.1} parent=1 // pred_check_branch
      %614 = sbr.rel (0) target = $region29
    $region28: #{tpu_custom_call.1} parent=1 // pred_region
      %615 = dma.done [#allocation5], 128
    $region29: #{tpu_custom_call.1} parent=1 // pred_fallthru
      _
    %616 = vsyncpa [#allocation4], 1
    %617 = vsyncpa [#allocation7], 1
    %618 = vsyncpa [#allocation5], 1

</llo_original>
